<compile_context>
chip_gen: v7x
topology: tpu7x:2x2x1
jax: 0.10.0
libtpu: 0.0.40
codegen_flags: <defaults>
</compile_context>

<pallas_src>
import functools

import jax
import jax.numpy as jnp
from jax.experimental import pallas as pl
from jax.experimental.pallas import tpu as pltpu


def embracenet_kernel(x_ref, w_ref, b_ref, idx_ref, out_ref, *,
                      num_modalities, embracement_size):
    """One batch tile.

    x_ref  : (TB, D_total)  bf16   concatenated modality features
    w_ref  : (D_total, M*E) bf16   block-diagonal docking weights
    b_ref  : (1, M*E)       f32    concatenated docking biases
    idx_ref: (TB, E)        int8   sampled modality index per embracement slot
    out_ref: (TB, E)        f32
    """
    E = embracement_size

    # Fused docking for all modalities: single MXU matmul, f32 accumulation.
    dock = jnp.dot(x_ref[...], w_ref[...], preferred_element_type=jnp.float32)
    dock = jnp.maximum(dock + b_ref[...], 0.0)          # (TB, M*E) f32, relu

    idx = idx_ref[...].astype(jnp.int32)                # (TB, E)

    # Exactly one modality per slot -> chained selects (no cast/mul/add).
    acc = dock[:, 0:E]                                  # modality 0 (overwritten where idx != 0)
    for i in range(1, num_modalities):                  # unrolled, M is static
        acc = jnp.where(idx == i, dock[:, i * E:(i + 1) * E], acc)

    out_ref[...] = acc


def init_embracenet_params(key, input_size_list, embracement_size):
    """Deterministic nn.Linear-style init: U(-1/sqrt(fan_in), 1/sqrt(fan_in))."""
    params = []
    for d in input_size_list:
        key, kw, kb = jax.random.split(key, 3)
        bound = 1.0 / jnp.sqrt(jnp.float32(d))
        w = jax.random.uniform(kw, (d, embracement_size), jnp.float32, -bound, bound)
        b = jax.random.uniform(kb, (embracement_size,), jnp.float32, -bound, bound)
        params.append((w, b))
    return params


def pack_embracenet_params(params, embracement_size):
    """Pack per-modality (W_i, b_i) into a block-diagonal bf16 weight and f32 bias."""
    E = embracement_size
    num_modalities = len(params)
    sizes = [w.shape[0] for w, _ in params]
    d_total = sum(sizes)

    w_blk = jnp.zeros((d_total, num_modalities * E), jnp.float32)
    off = 0
    for i, ((w, _), d) in enumerate(zip(params, sizes)):
        w_blk = w_blk.at[off:off + d, i * E:(i + 1) * E].set(w)
        off += d
    b_cat = jnp.concatenate([b for _, b in params]).reshape(1, num_modalities * E)
    return w_blk.astype(jnp.bfloat16), b_cat.astype(jnp.float32)


def embracenet_forward(input_list, packed_params, sample_key,
                       availabilities=None, selection_probabilities=None,
                       embracement_size=256, block_batch=512):
    num_modalities = len(input_list)
    batch_size = input_list[0].shape[0]
    E = embracement_size
    w_blk, b_cat = packed_params
    d_total = w_blk.shape[0]

    if availabilities is None:
        availabilities = jnp.ones((batch_size, num_modalities), jnp.float32)
    else:
        availabilities = availabilities.astype(jnp.float32)
    if selection_probabilities is None:
        selection_probabilities = jnp.ones((batch_size, num_modalities), jnp.float32)

    sel = selection_probabilities * availabilities
    # NOTE: like the PyTorch module, an all-unavailable row divides by zero -> NaN probs.
    sel = sel / jnp.sum(sel, axis=-1, keepdims=True)

    # torch.multinomial(sel, embracement_size, replacement=True) equivalent:
    # i.i.d. categorical draws per batch row.
    idx = jax.random.categorical(
        sample_key, jnp.log(sel), axis=-1,
        shape=(embracement_size, batch_size)).T.astype(jnp.int32)   # (B, E)
    idx_i8 = idx.astype(jnp.int8)                                   # M <= 127

    # Concatenate modality features; bf16 for the MXU and half the DMA bytes.
    x_cat = jnp.concatenate([x.astype(jnp.float32) for x in input_list],
                            axis=1).astype(jnp.bfloat16)            # (B, D_total)

    tb = batch_size if batch_size <= block_batch else block_batch
    grid = (pl.cdiv(batch_size, tb),)

    out = pl.pallas_call(
        functools.partial(embracenet_kernel,
                          num_modalities=num_modalities,
                          embracement_size=E),
        out_shape=jax.ShapeDtypeStruct((batch_size, E), jnp.float32),
        grid=grid,
        in_specs=[
            pl.BlockSpec((tb, d_total), lambda i: (i, 0)),                  # x tile
            pl.BlockSpec((d_total, num_modalities * E), lambda i: (0, 0)),  # weights (resident)
            pl.BlockSpec((1, num_modalities * E), lambda i: (0, 0)),        # bias    (resident)
            pl.BlockSpec((tb, E), lambda i: (i, 0)),                        # idx tile
        ],
        out_specs=pl.BlockSpec((tb, E), lambda i: (i, 0)),
        compiler_params=pltpu.CompilerParams(
            dimension_semantics=("parallel",)),
    )(x_cat, w_blk, b_cat, idx_i8)
    return out, idx


def embracenet_reference(input_list, params, idx, embracement_size):
    """Pure-JAX f32 reference with the same sampled indices (for verification)."""
    docks = [jnp.maximum(x @ w + b, 0.0) for x, (w, b) in zip(input_list, params)]
    stack = jnp.stack(docks, axis=-1)                       # (B, E, M)
    toggles = jax.nn.one_hot(idx, len(input_list), dtype=jnp.float32)
    return jnp.sum(stack * toggles, axis=-1)


if __name__ == "__main__":
    key = jax.random.PRNGKey(0)

    input_size_list = [32, 48, 16]   # three modalities
    embracement_size = 256
    batch_size = 8

    key, kp, ks, *kx = jax.random.split(key, 3 + len(input_size_list))
    params = init_embracenet_params(kp, input_size_list, embracement_size)
    packed = pack_embracenet_params(params, embracement_size)
    input_list = [jax.random.normal(k, (batch_size, d), jnp.float32)
                  for k, d in zip(kx, input_size_list)]

    out, idx = embracenet_forward(input_list, packed, ks,
                                  embracement_size=embracement_size)
    out = jax.block_until_ready(out)

    ref = embracenet_reference(input_list, params, idx, embracement_size)
    assert out.shape == (batch_size, embracement_size)
    # bf16 matmul inputs (f32 accumulation) -> loosened tolerance vs. f32 reference.
    assert jnp.allclose(out, ref, atol=3e-2, rtol=3e-2), float(jnp.max(jnp.abs(out - ref)))

    print("KERNEL_OK")
</pallas_src>

<mosaic_0001>
module attributes {stable_mosaic.version = 11 : i64} {
  func.func @embracenet_kernel(%arg0: i32, %arg1: memref<8x96xbf16, #tpu.memory_space<vmem>>, %arg2: memref<96x768xbf16, #tpu.memory_space<vmem>>, %arg3: memref<1x768xf32, #tpu.memory_space<vmem>>, %arg4: memref<8x256xi8, #tpu.memory_space<vmem>>, %arg5: memref<8x256xf32, #tpu.memory_space<vmem>>) attributes {dimension_semantics = [#tpu.dimension_semantics<parallel>], iteration_bounds = array<i64: 1>, scalar_prefetch = 0 : i64, scratch_operands = 0 : i64, tpu.core_type = #tpu.core_type<tc>, window_params = [{transform_indices = @transform_0, window_bounds = array<i64: 8, 96>}, {pipeline_mode = #tpu.pipeline_mode<synchronous>, transform_indices = @transform_1, window_bounds = array<i64: 96, 768>}, {pipeline_mode = #tpu.pipeline_mode<synchronous>, transform_indices = @transform_2, window_bounds = array<i64: 1, 768>}, {transform_indices = @transform_3, window_bounds = array<i64: 8, 256>}, {transform_indices = @transform_4, window_bounds = array<i64: 8, 256>}]} {
    %c0 = arith.constant 0 : index
    %c0_0 = arith.constant 0 : index
    %0 = vector.load %arg1[%c0, %c0_0] : memref<8x96xbf16, #tpu.memory_space<vmem>>, vector<8x96xbf16>
    %c0_1 = arith.constant 0 : index
    %c0_2 = arith.constant 0 : index
    %1 = vector.load %arg2[%c0_1, %c0_2] : memref<96x768xbf16, #tpu.memory_space<vmem>>, vector<96x768xbf16>
    %cst = arith.constant dense<0.000000e+00> : vector<8x768xf32>
    %2 = tpu.matmul %0, %1, %cst {dimension_numbers = #tpu.dot_dimension_numbers<[1], [0], [0], [1], [0, 0, 1, 1], [], []>} : vector<8x96xbf16>, vector<96x768xbf16>, vector<8x768xf32> -> vector<8x768xf32>
    %c0_3 = arith.constant 0 : index
    %c0_4 = arith.constant 0 : index
    %3 = vector.load %arg3[%c0_3, %c0_4] : memref<1x768xf32, #tpu.memory_space<vmem>>, vector<1x768xf32>
    %4 = vector.broadcast %3 : vector<1x768xf32> to vector<8x768xf32>
    %5 = arith.addf %2, %4 : vector<8x768xf32>
    %cst_5 = arith.constant 0.000000e+00 : f32
    %6 = vector.broadcast %cst_5 : f32 to vector<8x768xf32>
    %7 = arith.maximumf %5, %6 : vector<8x768xf32>
    %c0_6 = arith.constant 0 : index
    %c0_7 = arith.constant 0 : index
    %8 = vector.load %arg4[%c0_6, %c0_7] : memref<8x256xi8, #tpu.memory_space<vmem>>, vector<8x256xi8>
    %9 = arith.extsi %8 : vector<8x256xi8> to vector<8x256xi32>
    %10 = vector.extract_strided_slice %7 {offsets = [0, 0], sizes = [8, 256], strides = [1, 1]} : vector<8x768xf32> to vector<8x256xf32>
    %c1_i32 = arith.constant 1 : i32
    %11 = vector.broadcast %c1_i32 : i32 to vector<8x256xi32>
    %12 = arith.cmpi eq, %9, %11 : vector<8x256xi32>
    %13 = vector.extract_strided_slice %7 {offsets = [0, 256], sizes = [8, 256], strides = [1, 1]} : vector<8x768xf32> to vector<8x256xf32>
    %14 = arith.select %12, %13, %10 : vector<8x256xi1>, vector<8x256xf32>
    %c2_i32 = arith.constant 2 : i32
    %15 = vector.broadcast %c2_i32 : i32 to vector<8x256xi32>
    %16 = arith.cmpi eq, %9, %15 : vector<8x256xi32>
    %17 = vector.extract_strided_slice %7 {offsets = [0, 512], sizes = [8, 256], strides = [1, 1]} : vector<8x768xf32> to vector<8x256xf32>
    %18 = arith.select %16, %17, %14 : vector<8x256xi1>, vector<8x256xf32>
    %c0_8 = arith.constant 0 : index
    %c0_9 = arith.constant 0 : index
    %19 = vector.load %arg5[%c0_8, %c0_9] : memref<8x256xf32, #tpu.memory_space<vmem>>, vector<8x256xf32>
    tpu.vector_store %arg5[%c0_8, %c0_9], %18 {strides = array<i32>} : memref<8x256xf32, #tpu.memory_space<vmem>>, vector<8x256xf32>,
    return
  }
  func.func @transform_0(%arg0: i32) -> (i32, i32) {
    %c0_i32 = arith.constant 0 : i32
    %c0_i32_0 = arith.constant 0 : i32
    return %arg0, %c0_i32 : i32, i32
  }
  func.func @transform_1(%arg0: i32) -> (i32, i32) {
    %c0_i32 = arith.constant 0 : i32
    %c0_i32_0 = arith.constant 0 : i32
    %c0_i32_1 = arith.constant 0 : i32
    return %c0_i32, %c0_i32_0 : i32, i32
  }
  func.func @transform_2(%arg0: i32) -> (i32, i32) {
    %c0_i32 = arith.constant 0 : i32
    %c0_i32_0 = arith.constant 0 : i32
    %c0_i32_1 = arith.constant 0 : i32
    return %c0_i32, %c0_i32_0 : i32, i32
  }
  func.func @transform_3(%arg0: i32) -> (i32, i32) {
    %c0_i32 = arith.constant 0 : i32
    %c0_i32_0 = arith.constant 0 : i32
    return %arg0, %c0_i32 : i32, i32
  }
  func.func @transform_4(%arg0: i32) -> (i32, i32) {
    %c0_i32 = arith.constant 0 : i32
    %c0_i32_0 = arith.constant 0 : i32
    return %arg0, %c0_i32 : i32, i32
  }
}

</mosaic_0001>

<llo_original>
// kernel: tpu_custom_call.1
$region0: #{tpu_custom_call.1}
  #allocation0 [shape = 'u32[]', space=smem, size = 0x4, offset = 0x4, fixed_abs, tag = 'smem constant byte address 0x4 - core index']
  #allocation1 [shape = 'u32[144,128]{1,0:T(1,128)}', space=vmem, size = 0x12000, scoped, tag = 'internal scratch']
  %s0 = inlined_call_operand.hbm [shape: bf16[8,96], index: 0, kind: input, shape index: {}]
  %s1 = inlined_call_operand.hbm [shape: bf16[96,768], index: 1, kind: input, shape index: {}]
  %s2 = inlined_call_operand.vmem [shape: f32[1,768], index: 2, kind: input, shape index: {}]
  %s3 = inlined_call_operand.vmem [shape: s8[8,256], index: 3, kind: input, shape index: {}]
  %s4 = inlined_call_operand.hbm [shape: f32[8,256], index: 4, kind: output, shape index: {}]
  %s5 = sld [smem:[#allocation0]]
  $region34: #{tpu_custom_call.1} parent=0
    _
  %s7 = ssub.s32 1, %s5
  %s8 = scalar_select 0, %s7, %s5
  $region1: #{tpu_custom_call.1} parent=0
    #allocation2 [shape = 'u8[2048]{0}', space=vmem, size = 0x800, scoped, tag = 'input window, operand 0, single buffered']
    #allocation3 [shape = 's32[1]{0}', space=sflag, size = 0x4, scoped, tag = 'scoped memory for tpu_custom_call.1']
    #allocation4 [shape = 's32[1]{0}', space=sflag, size = 0x4, scoped, tag = 'scoped memory for tpu_custom_call.1']
    #allocation5 [shape = 'u8[147456]{0}', space=vmem, size = 0x24000, scoped, tag = 'input window, operand 1, single buffered']
    #allocation6 [shape = 's32[1]{0}', space=sflag, size = 0x4, scoped, tag = 'scoped memory for tpu_custom_call.1']
    #allocation7 [shape = 'u8[8192]{0}', space=vmem, size = 0x2000, scoped, tag = 'output window, operand 0, single buffered']
    %9 = vsyncpa [#allocation3], 0
    %10 = vsyncpa [#allocation6], 0
    %11 = vsyncpa [#allocation4], 0
    // Predicated region
    $region2: #{tpu_custom_call.1} parent=1 // pred_check
      _
    $region3: #{tpu_custom_call.1} parent=1 // pred_check_branch
      %13 = sbr.rel (0) target = $region5
    $region4: #{tpu_custom_call.1} parent=1 // pred_region
      %s15 = ssub.s32 64, 64
      %16 = vsyncadd [#allocation3], %s15
      %s18 = sshll.u32 [#allocation2], 4
      %s19 = int_to_ptr.vmem [resolvable:$true] %s18
      %21 = dma.hbm_to_vmem [thread:$0]  %s0, 64, %s19, [#allocation3]
    $region5: #{tpu_custom_call.1} parent=1 // pred_fallthru
      _
    // Predicated region
    $region6: #{tpu_custom_call.1} parent=1 // pred_check
      _
    $region7: #{tpu_custom_call.1} parent=1 // pred_check_branch
      %23 = sbr.rel (0) target = $region9
    $region8: #{tpu_custom_call.1} parent=1 // pred_region
      %s25 = ssub.s32 4608, 4608
      %26 = vsyncadd [#allocation6], %s25
      %s27 = sshll.u32 [#allocation5], 4
      %s28 = int_to_ptr.vmem [resolvable:$true] %s27
      %33 = dma.hbm_to_vmem [thread:$0]  %s1, 4608, %s28, [#allocation6], 384, 384, 24
    $region9: #{tpu_custom_call.1} parent=1 // pred_fallthru
      _
    // Predicated region
    $region10: #{tpu_custom_call.1} parent=1 // pred_check
      _
    $region11: #{tpu_custom_call.1} parent=1 // pred_check_branch
      %35 = sbr.rel (0) target = $region13
    $region12: #{tpu_custom_call.1} parent=1 // pred_region
      _
    $region13: #{tpu_custom_call.1} parent=1 // pred_fallthru
      _
    // Predicated region
    $region14: #{tpu_custom_call.1} parent=1 // pred_check
      _
    $region15: #{tpu_custom_call.1} parent=1 // pred_check_branch
      %37 = sbr.rel (0) target = $region17
    $region16: #{tpu_custom_call.1} parent=1 // pred_region
      _
    $region17: #{tpu_custom_call.1} parent=1 // pred_fallthru
      _
    // Predicated region
    $region18: #{tpu_custom_call.1} parent=1 // pred_check
      _
    $region19: #{tpu_custom_call.1} parent=1 // pred_check_branch
      %39 = sbr.rel (0) target = $region21
    $region20: #{tpu_custom_call.1} parent=1 // pred_region
      %40 = dma.done [#allocation3], 64
    $region21: #{tpu_custom_call.1} parent=1 // pred_fallthru
      _
    // Predicated region
    $region22: #{tpu_custom_call.1} parent=1 // pred_check
      _
    $region23: #{tpu_custom_call.1} parent=1 // pred_check_branch
      %42 = sbr.rel (0) target = $region25
    $region24: #{tpu_custom_call.1} parent=1 // pred_region
      %43 = dma.done [#allocation6], 4608
    $region25: #{tpu_custom_call.1} parent=1 // pred_fallthru
      _
    %v45 = vld [vmem:[#allocation2] sm:$0xf]
    %v46 = vld [vmem:[#allocation5] sm:$0xff]
    %v47 = vld [vmem:[#allocation5 + $0x8] sm:$0xff]
    %v48 = vld [vmem:[#allocation5 + $0x10] sm:$0xff]
    %v49 = vld [vmem:[#allocation5 + $0x18] sm:$0xff]
    %v50 = vld [vmem:[#allocation5 + $0x20] sm:$0xff]
    %v51 = vld [vmem:[#allocation5 + $0x28] sm:$0xff]
    %v52 = vld [vmem:[#allocation5 + $0x30] sm:$0xff]
    %v53 = vld [vmem:[#allocation5 + $0x38] sm:$0xff]
    %v54 = vld [vmem:[#allocation5 + $0x40] sm:$0xff]
    %v55 = vld [vmem:[#allocation5 + $0x48] sm:$0xff]
    %v56 = vld [vmem:[#allocation5 + $0x50] sm:$0xff]
    %v57 = vld [vmem:[#allocation5 + $0x58] sm:$0xff]
    %v58 = vld [vmem:[#allocation5 + $0x60] sm:$0xff]
    %v59 = vld [vmem:[#allocation5 + $0x68] sm:$0xff]
    %v60 = vld [vmem:[#allocation5 + $0x70] sm:$0xff]
    %v61 = vld [vmem:[#allocation5 + $0x78] sm:$0xff]
    %v62 = vld [vmem:[#allocation5 + $0x80] sm:$0xff]
    %v63 = vld [vmem:[#allocation5 + $0x88] sm:$0xff]
    %v64 = vld [vmem:[#allocation5 + $0x90] sm:$0xff]
    %v65 = vld [vmem:[#allocation5 + $0x98] sm:$0xff]
    %v66 = vld [vmem:[#allocation5 + $0xa0] sm:$0xff]
    %v67 = vld [vmem:[#allocation5 + $0xa8] sm:$0xff]
    %v68 = vld [vmem:[#allocation5 + $0xb0] sm:$0xff]
    %v69 = vld [vmem:[#allocation5 + $0xb8] sm:$0xff]
    %v70 = vld [vmem:[#allocation5 + $0xc0] sm:$0xff]
    %v71 = vld [vmem:[#allocation5 + $0xc8] sm:$0xff]
    %v72 = vld [vmem:[#allocation5 + $0xd0] sm:$0xff]
    %v73 = vld [vmem:[#allocation5 + $0xd8] sm:$0xff]
    %v74 = vld [vmem:[#allocation5 + $0xe0] sm:$0xff]
    %v75 = vld [vmem:[#allocation5 + $0xe8] sm:$0xff]
    %v76 = vld [vmem:[#allocation5 + $0xf0] sm:$0xff]
    %v77 = vld [vmem:[#allocation5 + $0xf8] sm:$0xff]
    %v78 = vld [vmem:[#allocation5 + $0x100] sm:$0xff]
    %v79 = vld [vmem:[#allocation5 + $0x108] sm:$0xff]
    %v80 = vld [vmem:[#allocation5 + $0x110] sm:$0xff]
    %v81 = vld [vmem:[#allocation5 + $0x118] sm:$0xff]
    %v82 = vld [vmem:[%s2] sm:$0x3f]
    %v84 = vlaneseq
    %v85 = vshrl.u32 %v84, 7
    %v86 = vsub.s32 0, %v85
    %v87 = vrot.slane %v82, %v86
    %v88 = vlaneseq
    %v89 = vshrl.u32 %v88, 7
    %v90 = vsub.s32 1, %v89
    %v91 = vrot.slane %v82, %v90
    %v92 = vlaneseq
    %v93 = vshrl.u32 %v92, 7
    %v94 = vsub.s32 2, %v93
    %v95 = vrot.slane %v82, %v94
    %v96 = vlaneseq
    %v97 = vshrl.u32 %v96, 7
    %v98 = vsub.s32 3, %v97
    %v99 = vrot.slane %v82, %v98
    %v100 = vlaneseq
    %v101 = vshrl.u32 %v100, 7
    %v102 = vsub.s32 4, %v101
    %v103 = vrot.slane %v82, %v102
    %v104 = vlaneseq
    %v105 = vshrl.u32 %v104, 7
    %v106 = vsub.s32 5, %v105
    %v107 = vrot.slane %v82, %v106
    %v150 = vunpack.c.l.b16 %v46
    %v151 = vunpack.c.h.b16 %v46
    %v152 = vunpack.c.l.b16 %v47
    %v153 = vunpack.c.h.b16 %v47
    %v154 = vunpack.c.l.b16 %v48
    %v155 = vunpack.c.h.b16 %v48
    %v156 = vunpack.c.l.b16 %v49
    %v157 = vunpack.c.h.b16 %v49
    %v158 = vunpack.c.l.b16 %v50
    %v159 = vunpack.c.h.b16 %v50
    %v160 = vunpack.c.l.b16 %v51
    %v161 = vunpack.c.h.b16 %v51
    %v162 = vunpack.c.l.b16 %v52
    %v163 = vunpack.c.h.b16 %v52
    %v164 = vunpack.c.l.b16 %v53
    %v165 = vunpack.c.h.b16 %v53
    %v166 = vunpack.c.l.b16 %v54
    %v167 = vunpack.c.h.b16 %v54
    %v168 = vunpack.c.l.b16 %v55
    %v169 = vunpack.c.h.b16 %v55
    %v170 = vunpack.c.l.b16 %v56
    %v171 = vunpack.c.h.b16 %v56
    %v172 = vunpack.c.l.b16 %v57
    %v173 = vunpack.c.h.b16 %v57
    %v174 = vunpack.c.l.b16 %v58
    %v175 = vunpack.c.h.b16 %v58
    %v176 = vunpack.c.l.b16 %v59
    %v177 = vunpack.c.h.b16 %v59
    %v178 = vunpack.c.l.b16 %v60
    %v179 = vunpack.c.h.b16 %v60
    %v180 = vunpack.c.l.b16 %v61
    %v181 = vunpack.c.h.b16 %v61
    %v182 = vunpack.c.l.b16 %v62
    %v183 = vunpack.c.h.b16 %v62
    %v184 = vunpack.c.l.b16 %v63
    %v185 = vunpack.c.h.b16 %v63
    %v186 = vunpack.c.l.b16 %v64
    %v187 = vunpack.c.h.b16 %v64
    %v188 = vunpack.c.l.b16 %v65
    %v189 = vunpack.c.h.b16 %v65
    %v190 = vunpack.c.l.b16 %v66
    %v191 = vunpack.c.h.b16 %v66
    %v192 = vunpack.c.l.b16 %v67
    %v193 = vunpack.c.h.b16 %v67
    %v194 = vunpack.c.l.b16 %v68
    %v195 = vunpack.c.h.b16 %v68
    %v196 = vunpack.c.l.b16 %v69
    %v197 = vunpack.c.h.b16 %v69
    %v198 = vunpack.c.l.b16 %v70
    %v199 = vunpack.c.h.b16 %v70
    %v200 = vunpack.c.l.b16 %v71
    %v201 = vunpack.c.h.b16 %v71
    %v202 = vunpack.c.l.b16 %v72
    %v203 = vunpack.c.h.b16 %v72
    %v204 = vunpack.c.l.b16 %v73
    %v205 = vunpack.c.h.b16 %v73
    %v206 = vunpack.c.l.b16 %v74
    %v207 = vunpack.c.h.b16 %v74
    %v208 = vunpack.c.l.b16 %v75
    %v209 = vunpack.c.h.b16 %v75
    %v210 = vunpack.c.l.b16 %v76
    %v211 = vunpack.c.h.b16 %v76
    %v212 = vunpack.c.l.b16 %v77
    %v213 = vunpack.c.h.b16 %v77
    %v214 = vunpack.c.l.b16 %v78
    %v215 = vunpack.c.h.b16 %v78
    %v216 = vunpack.c.l.b16 %v79
    %v217 = vunpack.c.h.b16 %v79
    %v218 = vunpack.c.l.b16 %v80
    %v219 = vunpack.c.h.b16 %v80
    %v220 = vunpack.c.l.b16 %v81
    %v221 = vunpack.c.h.b16 %v81
    %v222 = vpack.c.b16 %v156, %v150
    %v223 = vpack.c.b16 %v157, %v151
    %v224 = vpack.c.b16 %v158, %v152
    %v225 = vpack.c.b16 %v159, %v153
    %v226 = vpack.c.b16 %v160, %v154
    %v227 = vpack.c.b16 %v161, %v155
    %v228 = vpack.c.b16 %v168, %v162
    %v229 = vpack.c.b16 %v169, %v163
    %v230 = vpack.c.b16 %v170, %v164
    %v231 = vpack.c.b16 %v171, %v165
    %v232 = vpack.c.b16 %v172, %v166
    %v233 = vpack.c.b16 %v173, %v167
    %v234 = vpack.c.b16 %v180, %v174
    %v235 = vpack.c.b16 %v181, %v175
    %v236 = vpack.c.b16 %v182, %v176
    %v237 = vpack.c.b16 %v183, %v177
    %v238 = vpack.c.b16 %v184, %v178
    %v239 = vpack.c.b16 %v185, %v179
    %v240 = vpack.c.b16 %v192, %v186
    %v241 = vpack.c.b16 %v193, %v187
    %v242 = vpack.c.b16 %v194, %v188
    %v243 = vpack.c.b16 %v195, %v189
    %v244 = vpack.c.b16 %v196, %v190
    %v245 = vpack.c.b16 %v197, %v191
    %v246 = vpack.c.b16 %v204, %v198
    %v247 = vpack.c.b16 %v205, %v199
    %v248 = vpack.c.b16 %v206, %v200
    %v249 = vpack.c.b16 %v207, %v201
    %v250 = vpack.c.b16 %v208, %v202
    %v251 = vpack.c.b16 %v209, %v203
    %v252 = vpack.c.b16 %v216, %v210
    %v253 = vpack.c.b16 %v217, %v211
    %v254 = vpack.c.b16 %v218, %v212
    %v255 = vpack.c.b16 %v219, %v213
    %v256 = vpack.c.b16 %v220, %v214
    %v257 = vpack.c.b16 %v221, %v215
    %vm294 = vcmask 785408
    %v296 = vsel %vm294, %v45, 0
    %298 = vmatprep.subr.bf16.mxu0 %v223
    %299 = vmatpush1.bf16.msra.mxu0 %v222
    %300 = vmatprep.subr.bf16.mxu0 %v229
    %301 = vmatpush1.bf16.msra.mxu0 %v228
    %302 = vmatprep.subr.bf16.mxu0 %v235
    %303 = vmatpush1.bf16.msra.mxu0 %v234
    %304 = vmatprep.subr.bf16.mxu0 %v241
    %305 = vmatpush1.bf16.msra.mxu0 %v240
    %306 = vmatprep.subr.bf16.mxu0 %v247
    %307 = vmatpush1.bf16.msra.mxu0 %v246
    %308 = vmatprep.subr.bf16.mxu0 %v253
    %309 = vmatpush1.bf16.msra.mxu0 %v252
    %310 = vmatprep.subr.bf16.mxu0 0
    %311 = vmatpush1.bf16.msra.mxu0 0
    %312 = vmatprep.subr.bf16.mxu0 0
    %313 = vmatpush1.bf16.msra.mxu0 0
    %314 = vmatprep.subr.bf16.mxu0 0
    %315 = vmatpush1.bf16.msra.mxu0 0
    %316 = vmatprep.subr.bf16.mxu0 0
    %317 = vmatpush1.bf16.msra.mxu0 0
    %318 = vmatprep.subr.bf16.mxu0 0
    %319 = vmatpush1.bf16.msra.mxu0 0
    %320 = vmatprep.subr.bf16.mxu0 0
    %321 = vmatpush1.bf16.msra.mxu0 0
    %322 = vmatprep.subr.bf16.mxu0 0
    %323 = vmatpush1.bf16.msra.mxu0 0
    %324 = vmatprep.subr.bf16.mxu0 0
    %325 = vmatpush1.bf16.msra.mxu0 0
    %326 = vmatprep.subr.bf16.mxu0 0
    %327 = vmatpush1.bf16.msra.mxu0 0
    %328 = vmatprep.subr.bf16.mxu0 0
    %329 = vmatpush1.bf16.msra.mxu0 0
    %330 = vmatprep.mubr.bf16.mxu0 0
    %331 = vmatmul.mubr.bf16.gmra.mrb[0].mxu0 %v296
    %v332 = vpop.f32.mrb[0].mxu0
    %v333 = vadd.f32 %v87, %v332
    %v334 = vpop.f32.mrb[0].mxu0
    %v335 = vadd.f32 %v91, %v334
    %v336 = vpop.f32.mrb[0].mxu0
    %v337 = vpop.f32.mrb[0].mxu0
    %338 = vdwg.mxu0
    %339 = vmatprep.subr.bf16.mxu0 %v225
    %340 = vmatpush1.bf16.msra.mxu0 %v224
    %341 = vmatprep.subr.bf16.mxu0 %v231
    %342 = vmatpush1.bf16.msra.mxu0 %v230
    %343 = vmatprep.subr.bf16.mxu0 %v237
    %344 = vmatpush1.bf16.msra.mxu0 %v236
    %345 = vmatprep.subr.bf16.mxu0 %v243
    %346 = vmatpush1.bf16.msra.mxu0 %v242
    %347 = vmatprep.subr.bf16.mxu0 %v249
    %348 = vmatpush1.bf16.msra.mxu0 %v248
    %349 = vmatprep.subr.bf16.mxu0 %v255
    %350 = vmatpush1.bf16.msra.mxu0 %v254
    %351 = vmatprep.subr.bf16.mxu0 0
    %352 = vmatpush1.bf16.msra.mxu0 0
    %353 = vmatprep.subr.bf16.mxu0 0
    %354 = vmatpush1.bf16.msra.mxu0 0
    %355 = vmatprep.subr.bf16.mxu0 0
    %356 = vmatpush1.bf16.msra.mxu0 0
    %357 = vmatprep.subr.bf16.mxu0 0
    %358 = vmatpush1.bf16.msra.mxu0 0
    %359 = vmatprep.subr.bf16.mxu0 0
    %360 = vmatpush1.bf16.msra.mxu0 0
    %361 = vmatprep.subr.bf16.mxu0 0
    %362 = vmatpush1.bf16.msra.mxu0 0
    %363 = vmatprep.subr.bf16.mxu0 0
    %364 = vmatpush1.bf16.msra.mxu0 0
    %365 = vmatprep.subr.bf16.mxu0 0
    %366 = vmatpush1.bf16.msra.mxu0 0
    %367 = vmatprep.subr.bf16.mxu0 0
    %368 = vmatpush1.bf16.msra.mxu0 0
    %369 = vmatprep.subr.bf16.mxu0 0
    %370 = vmatpush1.bf16.msra.mxu0 0
    %371 = vmatprep.mubr.bf16.mxu0 0
    %372 = vmatmul.mubr.bf16.gmra.mrb[0].mxu0 %v296
    %v373 = vpop.f32.mrb[0].mxu0
    %v374 = vadd.f32 %v95, %v373
    %v375 = vpop.f32.mrb[0].mxu0
    %v376 = vadd.f32 %v99, %v375
    %v377 = vpop.f32.mrb[0].mxu0
    %v378 = vpop.f32.mrb[0].mxu0
    %379 = vdwg.mxu0
    %380 = vmatprep.subr.bf16.mxu0 %v227
    %381 = vmatpush1.bf16.msra.mxu0 %v226
    %382 = vmatprep.subr.bf16.mxu0 %v233
    %383 = vmatpush1.bf16.msra.mxu0 %v232
    %384 = vmatprep.subr.bf16.mxu0 %v239
    %385 = vmatpush1.bf16.msra.mxu0 %v238
    %386 = vmatprep.subr.bf16.mxu0 %v245
    %387 = vmatpush1.bf16.msra.mxu0 %v244
    %388 = vmatprep.subr.bf16.mxu0 %v251
    %389 = vmatpush1.bf16.msra.mxu0 %v250
    %390 = vmatprep.subr.bf16.mxu0 %v257
    %391 = vmatpush1.bf16.msra.mxu0 %v256
    %392 = vmatprep.subr.bf16.mxu0 0
    %393 = vmatpush1.bf16.msra.mxu0 0
    %394 = vmatprep.subr.bf16.mxu0 0
    %395 = vmatpush1.bf16.msra.mxu0 0
    %396 = vmatprep.subr.bf16.mxu0 0
    %397 = vmatpush1.bf16.msra.mxu0 0
    %398 = vmatprep.subr.bf16.mxu0 0
    %399 = vmatpush1.bf16.msra.mxu0 0
    %400 = vmatprep.subr.bf16.mxu0 0
    %401 = vmatpush1.bf16.msra.mxu0 0
    %402 = vmatprep.subr.bf16.mxu0 0
    %403 = vmatpush1.bf16.msra.mxu0 0
    %404 = vmatprep.subr.bf16.mxu0 0
    %405 = vmatpush1.bf16.msra.mxu0 0
    %406 = vmatprep.subr.bf16.mxu0 0
    %407 = vmatpush1.bf16.msra.mxu0 0
    %408 = vmatprep.subr.bf16.mxu0 0
    %409 = vmatpush1.bf16.msra.mxu0 0
    %410 = vmatprep.subr.bf16.mxu0 0
    %411 = vmatpush1.bf16.msra.mxu0 0
    %412 = vmatprep.mubr.bf16.mxu0 0
    %413 = vmatmul.mubr.bf16.gmra.mrb[0].mxu0 %v296
    %v414 = vpop.f32.mrb[0].mxu0
    %v415 = vadd.f32 %v103, %v414
    %v416 = vpop.f32.mrb[0].mxu0
    %v417 = vadd.f32 %v107, %v416
    %v418 = vpop.f32.mrb[0].mxu0
    %v419 = vpop.f32.mrb[0].mxu0
    %420 = vdwg.mxu0
    %v421 = vmax.f32 %v333, 0.0
    %v422 = vmax.f32 %v335, 0.0
    %v423 = vmax.f32 %v374, 0.0
    %v424 = vmax.f32 %v376, 0.0
    %v425 = vmax.f32 %v415, 0.0
    %v426 = vmax.f32 %v417, 0.0
    %v427 = vld [vmem:[%s3] sm:$0xf]
    %v428 = vunpack.c.0.s8 %v427
    %v429 = vunpack.c.1.s8 %v427
    %vm430 = vcmp.eq.s32.totalorder %v428, 1
    %vm431 = vcmp.eq.s32.totalorder %v429, 1
    %v432 = vsel %vm430, %v423, %v421
    %v433 = vsel %vm431, %v424, %v422
    %vm434 = vcmp.eq.s32.totalorder %v428, 2
    %vm435 = vcmp.eq.s32.totalorder %v429, 2
    %v436 = vsel %vm434, %v425, %v432
    %v437 = vsel %vm435, %v426, %v433
    %438 = vst [vmem:[#allocation7] sm:$0xff] %v436
    %439 = vst [vmem:[#allocation7 + $0x8] sm:$0xff] %v437
    // Predicated region
    $region26: #{tpu_custom_call.1} parent=1 // pred_check
      _
    $region27: #{tpu_custom_call.1} parent=1 // pred_check_branch
      %441 = sbr.rel (0) target = $region29
    $region28: #{tpu_custom_call.1} parent=1 // pred_region
      %s443 = ssub.s32 256, 256
      %444 = vsyncadd [#allocation4], %s443
      %s446 = sshll.u32 [#allocation7], 4
      %s447 = int_to_ptr.vmem [resolvable:$true] %s446
      %449 = dma.vmem_to_hbm [thread:$0]  %s447, 256, %s4, [#allocation4]
    $region29: #{tpu_custom_call.1} parent=1 // pred_fallthru
      _
    // Predicated region
    $region30: #{tpu_custom_call.1} parent=1 // pred_check
      _
    $region31: #{tpu_custom_call.1} parent=1 // pred_check_branch
      %451 = sbr.rel (0) target = $region33
    $region32: #{tpu_custom_call.1} parent=1 // pred_region
      %452 = dma.done [#allocation4], 256
    $region33: #{tpu_custom_call.1} parent=1 // pred_fallthru
      _
    %453 = vsyncpa [#allocation3], 1
    %454 = vsyncpa [#allocation6], 1
    %455 = vsyncpa [#allocation4], 1

</llo_original>
